<compile_context>
chip_gen: v7x
topology: tpu7x:2x2x1
jax: 0.10.0
libtpu: 0.0.40
codegen_flags: <defaults>
</compile_context>

<pallas_src>
import math
import jax
import jax.numpy as jnp
from jax.experimental import pallas as pl
from jax.experimental.pallas import tpu as pltpu


def _round_up(x, m):
    return ((x + m - 1) // m) * m


def smallnn_kernel(x_ref, w1_ref, b1_ref, w2_ref, b2_ref, w3_ref, b3_ref, o_ref):
    # Cast the batch tile to bf16 in VMEM (VPU op, hidden under the DMA) so the
    # first two matmuls run at native bf16 MXU rate with f32 accumulation.
    x = x_ref[...].astype(jnp.bfloat16)
    # Layer 1: (TB, F) @ (F, H)
    h1 = jnp.dot(x, w1_ref[...], preferred_element_type=jnp.float32)
    h1 = jnp.maximum(h1 + b1_ref[...], 0.0)                 # f32 elementwise
    # Layer 2: (TB, H) @ (H, H)
    h2 = jnp.dot(h1.astype(jnp.bfloat16), w2_ref[...],
                 preferred_element_type=jnp.float32)
    h2 = jnp.maximum(h2 + b2_ref[...], 0.0)
    # Layer 3 stays f32 end-to-end for output parity (MXU has huge slack here).
    logits = jnp.dot(h2, w3_ref[...], preferred_element_type=jnp.float32)
    o_ref[...] = jax.nn.sigmoid(logits + b3_ref[...])


def prepare_params(params):
    """One-time cast of the large-matmul weights to bf16; biases / w3 stay f32."""
    return {
        "w1": params["w1"].astype(jnp.bfloat16),
        "b1": params["b1"].astype(jnp.float32),
        "w2": params["w2"].astype(jnp.bfloat16),
        "b2": params["b2"].astype(jnp.float32),
        "w3": params["w3"].astype(jnp.float32),
        "b3": params["b3"].astype(jnp.float32),
    }


def smallnn_forward(x, prepared, *, block_b=8192):
    """x: (B, in_shape) float32. prepared: output of prepare_params()."""
    w1, b1 = prepared["w1"], prepared["b1"]
    w2, b2 = prepared["w2"], prepared["b2"]
    w3, b3 = prepared["w3"], prepared["b3"]
    B, F = x.shape
    H = w1.shape[1]
    C = w3.shape[1]

    # Batch tile: multiple of 8 sublanes, capped so (a) it fits comfortably in
    # every generation's scoped VMEM at the default limit (block_b<=8192 ->
    # ~8 MB live) and (b) the grid has >=2 steps whenever possible so v7x's
    # two TensorCores both get work.
    half = _round_up(max((B + 1) // 2, 1), 8)
    TB = max(8, min(block_b, half))
    grid = (pl.cdiv(B, TB),)   # last block may overhang; OOB writes are masked

    # Weights/biases: full-array blocks with constant index_maps -> resident in
    # VMEM across all grid steps (DMA'd once).
    const = lambda a: pl.BlockSpec(a.shape, lambda i, _nd=a.ndim: (0,) * _nd)

    cost = pl.CostEstimate(
        flops=2 * B * (F * H + H * H + H * C),
        transcendentals=B * C,                       # sigmoid exp
        bytes_accessed=B * (4 * F + 4 * C)
        + w1.size * 2 + w2.size * 2 + w3.size * 4
        + (b1.size + b2.size + b3.size) * 4,
    )

    return pl.pallas_call(
        smallnn_kernel,
        out_shape=jax.ShapeDtypeStruct((B, C), jnp.float32),
        grid=grid,
        in_specs=[
            pl.BlockSpec((TB, F), lambda i: (i, 0)),   # batch-tiled f32 input
            const(w1), const(b1),
            const(w2), const(b2),
            const(w3), const(b3),
        ],
        out_specs=pl.BlockSpec((TB, C), lambda i: (i, 0)),
        compiler_params=pltpu.CompilerParams(
            dimension_semantics=("parallel",),          # megacore on v7x
        ),
        cost_estimate=cost,
    )(x, w1, b1, w2, b2, w3, b3)


def smallnn_reference(x, params):
    """Pure-JAX f32 reference for correctness checking."""
    h1 = jnp.maximum(x @ params["w1"] + params["b1"], 0.0)
    h2 = jnp.maximum(h1 @ params["w2"] + params["b2"], 0.0)
    return jax.nn.sigmoid(h2 @ params["w3"] + params["b3"])


def init_params(key, in_shape, n_hidden, n_classes):
    """Deterministic init mirroring nn.Linear default U(-1/sqrt(fan_in), +)."""
    def linear(k, fan_in, fan_out):
        kw, kb = jax.random.split(k)
        bound = 1.0 / math.sqrt(fan_in)
        w = jax.random.uniform(kw, (fan_in, fan_out), jnp.float32, -bound, bound)
        b = jax.random.uniform(kb, (1, fan_out), jnp.float32, -bound, bound)
        return w, b

    k1, k2, k3 = jax.random.split(key, 3)
    w1, b1 = linear(k1, in_shape, n_hidden)
    w2, b2 = linear(k2, n_hidden, n_hidden)
    w3, b3 = linear(k3, n_hidden, n_classes)
    return {"w1": w1, "b1": b1, "w2": w2, "b2": b2, "w3": w3, "b3": b3}


if __name__ == "__main__":
    key = jax.random.PRNGKey(0)
    k_params, k_x1, k_x2, k_x3 = jax.random.split(key, 4)

    in_shape = 32
    n_hidden = 64
    n_classes = 4

    params = init_params(k_params, in_shape, n_hidden, n_classes)
    prepared = prepare_params(params)   # bf16 weight cast happens exactly once

    # Case 1: B divisible by the tile -> exercises the 2-step grid path.
    x1 = jax.random.normal(k_x1, (16, in_shape), dtype=jnp.float32)
    out1 = jax.block_until_ready(smallnn_forward(x1, prepared, block_b=8))
    ref1 = smallnn_reference(x1, params)
    assert out1.shape == (16, n_classes)
    assert bool(jnp.all((out1 >= 0.0) & (out1 <= 1.0)))
    assert bool(jnp.allclose(out1, ref1, atol=3e-2, rtol=3e-2))  # bf16 matmul tol

    # Case 2: ragged batch (B=5 < TB=8) -> exercises the overhanging-block
    # path with no jnp.pad / slice-back.
    x2 = jax.random.normal(k_x2, (5, in_shape), dtype=jnp.float32)
    out2 = jax.block_until_ready(smallnn_forward(x2, prepared, block_b=8))
    ref2 = smallnn_reference(x2, params)
    assert out2.shape == (5, n_classes)
    assert bool(jnp.allclose(out2, ref2, atol=3e-2, rtol=3e-2))

    # Case 3: default block_b, non-divisible mid-size batch -> exercises the
    # ">=2 grid steps" tile selection plus a ragged tail block.
    x3 = jax.random.normal(k_x3, (300, in_shape), dtype=jnp.float32)
    out3 = jax.block_until_ready(smallnn_forward(x3, prepared))
    ref3 = smallnn_reference(x3, params)
    assert out3.shape == (300, n_classes)
    assert bool(jnp.allclose(out3, ref3, atol=3e-2, rtol=3e-2))

    print("KERNEL_OK")
</pallas_src>

<mosaic_0001>
module attributes {stable_mosaic.version = 11 : i64} {
  func.func @smallnn_kernel(%arg0: i32, %arg1: memref<8x32xf32, #tpu.memory_space<vmem>>, %arg2: memref<32x64xbf16, #tpu.memory_space<vmem>>, %arg3: memref<1x64xf32, #tpu.memory_space<vmem>>, %arg4: memref<64x64xbf16, #tpu.memory_space<vmem>>, %arg5: memref<1x64xf32, #tpu.memory_space<vmem>>, %arg6: memref<64x4xf32, #tpu.memory_space<vmem>>, %arg7: memref<1x4xf32, #tpu.memory_space<vmem>>, %arg8: memref<8x4xf32, #tpu.memory_space<vmem>>) attributes {dimension_semantics = [#tpu.dimension_semantics<parallel>], iteration_bounds = array<i64: 2>, scalar_prefetch = 0 : i64, scratch_operands = 0 : i64, tpu.core_type = #tpu.core_type<tc>, window_params = [{transform_indices = @transform_0, window_bounds = array<i64: 8, 32>}, {pipeline_mode = #tpu.pipeline_mode<synchronous>, transform_indices = @transform_1, window_bounds = array<i64: 32, 64>}, {pipeline_mode = #tpu.pipeline_mode<synchronous>, transform_indices = @transform_2, window_bounds = array<i64: 1, 64>}, {pipeline_mode = #tpu.pipeline_mode<synchronous>, transform_indices = @transform_3, window_bounds = array<i64: 64, 64>}, {pipeline_mode = #tpu.pipeline_mode<synchronous>, transform_indices = @transform_4, window_bounds = array<i64: 1, 64>}, {pipeline_mode = #tpu.pipeline_mode<synchronous>, transform_indices = @transform_5, window_bounds = array<i64: 64, 4>}, {pipeline_mode = #tpu.pipeline_mode<synchronous>, transform_indices = @transform_6, window_bounds = array<i64: 1, 4>}, {transform_indices = @transform_7, window_bounds = array<i64: 8, 4>}]} {
    %c0 = arith.constant 0 : index
    %c0_0 = arith.constant 0 : index
    %0 = vector.load %arg1[%c0, %c0_0] : memref<8x32xf32, #tpu.memory_space<vmem>>, vector<8x32xf32>
    %1 = arith.truncf %0 : vector<8x32xf32> to vector<8x32xbf16>
    %c0_1 = arith.constant 0 : index
    %c0_2 = arith.constant 0 : index
    %2 = vector.load %arg2[%c0_1, %c0_2] : memref<32x64xbf16, #tpu.memory_space<vmem>>, vector<32x64xbf16>
    %cst = arith.constant dense<0.000000e+00> : vector<8x64xf32>
    %3 = tpu.matmul %1, %2, %cst {dimension_numbers = #tpu.dot_dimension_numbers<[1], [0], [0], [1], [0, 0, 1, 1], [], []>} : vector<8x32xbf16>, vector<32x64xbf16>, vector<8x64xf32> -> vector<8x64xf32>
    %c0_3 = arith.constant 0 : index
    %c0_4 = arith.constant 0 : index
    %4 = vector.load %arg3[%c0_3, %c0_4] : memref<1x64xf32, #tpu.memory_space<vmem>>, vector<1x64xf32>
    %5 = vector.broadcast %4 : vector<1x64xf32> to vector<8x64xf32>
    %6 = arith.addf %3, %5 : vector<8x64xf32>
    %cst_5 = arith.constant 0.000000e+00 : f32
    %7 = vector.broadcast %cst_5 : f32 to vector<8x64xf32>
    %8 = arith.maximumf %6, %7 : vector<8x64xf32>
    %9 = arith.truncf %8 : vector<8x64xf32> to vector<8x64xbf16>
    %c0_6 = arith.constant 0 : index
    %c0_7 = arith.constant 0 : index
    %10 = vector.load %arg4[%c0_6, %c0_7] : memref<64x64xbf16, #tpu.memory_space<vmem>>, vector<64x64xbf16>
    %cst_8 = arith.constant dense<0.000000e+00> : vector<8x64xf32>
    %11 = tpu.matmul %9, %10, %cst_8 {dimension_numbers = #tpu.dot_dimension_numbers<[1], [0], [0], [1], [0, 0, 1, 1], [], []>} : vector<8x64xbf16>, vector<64x64xbf16>, vector<8x64xf32> -> vector<8x64xf32>
    %c0_9 = arith.constant 0 : index
    %c0_10 = arith.constant 0 : index
    %12 = vector.load %arg5[%c0_9, %c0_10] : memref<1x64xf32, #tpu.memory_space<vmem>>, vector<1x64xf32>
    %13 = vector.broadcast %12 : vector<1x64xf32> to vector<8x64xf32>
    %14 = arith.addf %11, %13 : vector<8x64xf32>
    %cst_11 = arith.constant 0.000000e+00 : f32
    %15 = vector.broadcast %cst_11 : f32 to vector<8x64xf32>
    %16 = arith.maximumf %14, %15 : vector<8x64xf32>
    %c0_12 = arith.constant 0 : index
    %c0_13 = arith.constant 0 : index
    %17 = vector.load %arg6[%c0_12, %c0_13] : memref<64x4xf32, #tpu.memory_space<vmem>>, vector<64x4xf32>
    %cst_14 = arith.constant dense<0.000000e+00> : vector<8x4xf32>
    %18 = tpu.matmul %16, %17, %cst_14 {dimension_numbers = #tpu.dot_dimension_numbers<[1], [0], [0], [1], [0, 0, 1, 1], [], []>} : vector<8x64xf32>, vector<64x4xf32>, vector<8x4xf32> -> vector<8x4xf32>
    %c0_15 = arith.constant 0 : index
    %c0_16 = arith.constant 0 : index
    %19 = vector.load %arg7[%c0_15, %c0_16] : memref<1x4xf32, #tpu.memory_space<vmem>>, vector<1x4xf32>
    %20 = vector.broadcast %19 : vector<1x4xf32> to vector<8x4xf32>
    %21 = arith.addf %18, %20 : vector<8x4xf32>
    %22 = arith.negf %21 : vector<8x4xf32>
    %23 = math.exp %22 : vector<8x4xf32>
    %cst_17 = arith.constant 1.000000e+00 : f32
    %24 = vector.broadcast %cst_17 : f32 to vector<8x4xf32>
    %25 = arith.addf %24, %23 : vector<8x4xf32>
    %26 = arith.divf %24, %25 : vector<8x4xf32>
    %c0_18 = arith.constant 0 : index
    %c0_19 = arith.constant 0 : index
    %27 = vector.load %arg8[%c0_18, %c0_19] : memref<8x4xf32, #tpu.memory_space<vmem>>, vector<8x4xf32>
    tpu.vector_store %arg8[%c0_18, %c0_19], %26 {strides = array<i32>} : memref<8x4xf32, #tpu.memory_space<vmem>>, vector<8x4xf32>,
    return
  }
  func.func @transform_0(%arg0: i32) -> (i32, i32) {
    %c0_i32 = arith.constant 0 : i32
    %c0_i32_0 = arith.constant 0 : i32
    return %arg0, %c0_i32 : i32, i32
  }
  func.func @transform_1(%arg0: i32) -> (i32, i32) {
    %c0_i32 = arith.constant 0 : i32
    %c0_i32_0 = arith.constant 0 : i32
    %c0_i32_1 = arith.constant 0 : i32
    return %c0_i32, %c0_i32_0 : i32, i32
  }
  func.func @transform_2(%arg0: i32) -> (i32, i32) {
    %c0_i32 = arith.constant 0 : i32
    %c0_i32_0 = arith.constant 0 : i32
    %c0_i32_1 = arith.constant 0 : i32
    return %c0_i32, %c0_i32_0 : i32, i32
  }
  func.func @transform_3(%arg0: i32) -> (i32, i32) {
    %c0_i32 = arith.constant 0 : i32
    %c0_i32_0 = arith.constant 0 : i32
    %c0_i32_1 = arith.constant 0 : i32
    return %c0_i32, %c0_i32_0 : i32, i32
  }
  func.func @transform_4(%arg0: i32) -> (i32, i32) {
    %c0_i32 = arith.constant 0 : i32
    %c0_i32_0 = arith.constant 0 : i32
    %c0_i32_1 = arith.constant 0 : i32
    return %c0_i32, %c0_i32_0 : i32, i32
  }
  func.func @transform_5(%arg0: i32) -> (i32, i32) {
    %c0_i32 = arith.constant 0 : i32
    %c0_i32_0 = arith.constant 0 : i32
    %c0_i32_1 = arith.constant 0 : i32
    return %c0_i32, %c0_i32_0 : i32, i32
  }
  func.func @transform_6(%arg0: i32) -> (i32, i32) {
    %c0_i32 = arith.constant 0 : i32
    %c0_i32_0 = arith.constant 0 : i32
    %c0_i32_1 = arith.constant 0 : i32
    return %c0_i32, %c0_i32_0 : i32, i32
  }
  func.func @transform_7(%arg0: i32) -> (i32, i32) {
    %c0_i32 = arith.constant 0 : i32
    %c0_i32_0 = arith.constant 0 : i32
    return %arg0, %c0_i32 : i32, i32
  }
}

</mosaic_0001>

<llo_original>
// kernel: tpu_custom_call.1
$region0: #{tpu_custom_call.1}
  #allocation0 [shape = 'u32[]', space=smem, size = 0x4, offset = 0x4, fixed_abs, tag = 'smem constant byte address 0x4 - core index']
  #allocation1 [shape = 'u32[144,128]{1,0:T(1,128)}', space=vmem, size = 0x12000, scoped, tag = 'internal scratch']
  %s0 = inlined_call_operand.vmem [shape: f32[16,32], index: 0, kind: input, shape index: {}]
  %s1 = inlined_call_operand.vmem [shape: bf16[32,64], index: 1, kind: input, shape index: {}]
  %s2 = inlined_call_operand.vmem [shape: f32[1,64], index: 2, kind: input, shape index: {}]
  %s3 = inlined_call_operand.vmem [shape: bf16[64,64], index: 3, kind: input, shape index: {}]
  %s4 = inlined_call_operand.vmem [shape: f32[1,64], index: 4, kind: input, shape index: {}]
  %s5 = inlined_call_operand.vmem [shape: f32[64,4], index: 5, kind: input, shape index: {}]
  %s6 = inlined_call_operand.vmem [shape: f32[1,4], index: 6, kind: input, shape index: {}]
  %s7 = inlined_call_operand.vmem [shape: f32[16,4], index: 7, kind: output, shape index: {}]
  %s8 = sld [smem:[#allocation0]]
  $region61: #{tpu_custom_call.1} parent=0
    _
  %s10 = ssub.s32 1, %s8
  %s11 = scalar_select 0, %s10, %s8
  loop: start=0, step=1, limit=4
  $region2: #{tpu_custom_call.1} parent=0 // loop_pre_header
    _
  $region3: #{tpu_custom_call.1} parent=0 // loop_header
    %s13 = sphi 0, %s17
    %p14 = scmp.ge.s32.totalorder %s13, 4
    %s23 = sphi 0, %s25
    %s26 = sphi 0, %s23
    %s27 = sphi 0, %s26
    %s43 = sphi 0, %s27
    %s47 = sphi 0, %s47
    %s49 = sphi 0, %s47
    %s50 = sphi 0, %s49
    %s64 = sphi 0, %s50
    %s68 = sphi 0, %s68
    %s70 = sphi 0, %s68
    %s71 = sphi 0, %s70
    %s85 = sphi 0, %s71
    %s89 = sphi 0, %s89
    %s91 = sphi 0, %s89
    %s92 = sphi 0, %s91
    %s106 = sphi 0, %s92
    %s110 = sphi 0, %s110
    %s112 = sphi 0, %s110
    %s113 = sphi 0, %s112
    %s127 = sphi 0, %s113
    %s131 = sphi 0, %s131
    %s133 = sphi 0, %s131
    %s134 = sphi 0, %s133
    %s148 = sphi 0, %s134
    %s152 = sphi 0, %s152
    %s154 = sphi 0, %s152
    %s155 = sphi 0, %s154
    %s169 = sphi 0, %s155
    %s175 = sphi 0, %s177
    %s178 = sphi 0, %s175
    %s179 = sphi 0, %s178
    %s195 = sphi 0, %s179
  $region4: #{tpu_custom_call.1} parent=0 // loop_header_branch
    %16 = sbr.rel (%p14) target = $region8
  $region5: #{tpu_custom_call.1} parent=0 // loop_body
    %s18 = ssub.s32 %s13, 1
    %s19 = ssub.s32 %s13, 2
    %s20 = sadd.s32 %s13, 1
    %s21 = ssub.s32 %s13, %s20
    %p22 = scmp.eq.s32.totalorder %s21, 0
    %s24 = sadd.s32 %s23, 1
    %s25 = scalar_select %p22, %s23, %s24
    %p28 = pneg %p22
    %p29 = scmp.eq.s32.totalorder %s13, 1
    %p30 = por %p28, %p29
    %p31 = scmp.ne.s32.totalorder %s23, %s26
    %p32 = scmp.eq.s32.totalorder %s13, 0
    %p33 = por %p31, %p32
    %p34 = scmp.ne.s32.totalorder %s23, %s26
    %p35 = scmp.eq.s32.totalorder %s18, 1
    %p36 = por %p34, %p35
    %p37 = scmp.ne.s32.totalorder %s26, %s27
    %p38 = scmp.eq.s32.totalorder %s18, 0
    %p39 = por %p37, %p38
    %p40 = scmp.ne.s32.totalorder %s26, %s27
    %p41 = scmp.eq.s32.totalorder %s19, 1
    %p42 = por %p40, %p41
    %p44 = scmp.ne.s32.totalorder %s27, %s43
    %p45 = scmp.eq.s32.totalorder %s19, 0
    %p46 = por %p44, %p45
    %s48 = sadd.s32 %s47, 1
    %p51 = scmp.eq.s32.totalorder %s13, 1
    %p52 = scmp.ne.s32.totalorder %s47, %s49
    %p53 = scmp.eq.s32.totalorder %s13, 0
    %p54 = por %p52, %p53
    %p55 = scmp.ne.s32.totalorder %s47, %s49
    %p56 = scmp.eq.s32.totalorder %s18, 1
    %p57 = por %p55, %p56
    %p58 = scmp.ne.s32.totalorder %s49, %s50
    %p59 = scmp.eq.s32.totalorder %s18, 0
    %p60 = por %p58, %p59
    %p61 = scmp.ne.s32.totalorder %s49, %s50
    %p62 = scmp.eq.s32.totalorder %s19, 1
    %p63 = por %p61, %p62
    %p65 = scmp.ne.s32.totalorder %s50, %s64
    %p66 = scmp.eq.s32.totalorder %s19, 0
    %p67 = por %p65, %p66
    %s69 = sadd.s32 %s68, 1
    %p72 = scmp.eq.s32.totalorder %s13, 1
    %p73 = scmp.ne.s32.totalorder %s68, %s70
    %p74 = scmp.eq.s32.totalorder %s13, 0
    %p75 = por %p73, %p74
    %p76 = scmp.ne.s32.totalorder %s68, %s70
    %p77 = scmp.eq.s32.totalorder %s18, 1
    %p78 = por %p76, %p77
    %p79 = scmp.ne.s32.totalorder %s70, %s71
    %p80 = scmp.eq.s32.totalorder %s18, 0
    %p81 = por %p79, %p80
    %p82 = scmp.ne.s32.totalorder %s70, %s71
    %p83 = scmp.eq.s32.totalorder %s19, 1
    %p84 = por %p82, %p83
    %p86 = scmp.ne.s32.totalorder %s71, %s85
    %p87 = scmp.eq.s32.totalorder %s19, 0
    %p88 = por %p86, %p87
    %s90 = sadd.s32 %s89, 1
    %p93 = scmp.eq.s32.totalorder %s13, 1
    %p94 = scmp.ne.s32.totalorder %s89, %s91
    %p95 = scmp.eq.s32.totalorder %s13, 0
    %p96 = por %p94, %p95
    %p97 = scmp.ne.s32.totalorder %s89, %s91
    %p98 = scmp.eq.s32.totalorder %s18, 1
    %p99 = por %p97, %p98
    %p100 = scmp.ne.s32.totalorder %s91, %s92
    %p101 = scmp.eq.s32.totalorder %s18, 0
    %p102 = por %p100, %p101
    %p103 = scmp.ne.s32.totalorder %s91, %s92
    %p104 = scmp.eq.s32.totalorder %s19, 1
    %p105 = por %p103, %p104
    %p107 = scmp.ne.s32.totalorder %s92, %s106
    %p108 = scmp.eq.s32.totalorder %s19, 0
    %p109 = por %p107, %p108
    %s111 = sadd.s32 %s110, 1
    %p114 = scmp.eq.s32.totalorder %s13, 1
    %p115 = scmp.ne.s32.totalorder %s110, %s112
    %p116 = scmp.eq.s32.totalorder %s13, 0
    %p117 = por %p115, %p116
    %p118 = scmp.ne.s32.totalorder %s110, %s112
    %p119 = scmp.eq.s32.totalorder %s18, 1
    %p120 = por %p118, %p119
    %p121 = scmp.ne.s32.totalorder %s112, %s113
    %p122 = scmp.eq.s32.totalorder %s18, 0
    %p123 = por %p121, %p122
    %p124 = scmp.ne.s32.totalorder %s112, %s113
    %p125 = scmp.eq.s32.totalorder %s19, 1
    %p126 = por %p124, %p125
    %p128 = scmp.ne.s32.totalorder %s113, %s127
    %p129 = scmp.eq.s32.totalorder %s19, 0
    %p130 = por %p128, %p129
    %s132 = sadd.s32 %s131, 1
    %p135 = scmp.eq.s32.totalorder %s13, 1
    %p136 = scmp.ne.s32.totalorder %s131, %s133
    %p137 = scmp.eq.s32.totalorder %s13, 0
    %p138 = por %p136, %p137
    %p139 = scmp.ne.s32.totalorder %s131, %s133
    %p140 = scmp.eq.s32.totalorder %s18, 1
    %p141 = por %p139, %p140
    %p142 = scmp.ne.s32.totalorder %s133, %s134
    %p143 = scmp.eq.s32.totalorder %s18, 0
    %p144 = por %p142, %p143
    %p145 = scmp.ne.s32.totalorder %s133, %s134
    %p146 = scmp.eq.s32.totalorder %s19, 1
    %p147 = por %p145, %p146
    %p149 = scmp.ne.s32.totalorder %s134, %s148
    %p150 = scmp.eq.s32.totalorder %s19, 0
    %p151 = por %p149, %p150
    %s153 = sadd.s32 %s152, 1
    %p156 = scmp.eq.s32.totalorder %s13, 1
    %p157 = scmp.ne.s32.totalorder %s152, %s154
    %p158 = scmp.eq.s32.totalorder %s13, 0
    %p159 = por %p157, %p158
    %p160 = scmp.ne.s32.totalorder %s152, %s154
    %p161 = scmp.eq.s32.totalorder %s18, 1
    %p162 = por %p160, %p161
    %p163 = scmp.ne.s32.totalorder %s154, %s155
    %p164 = scmp.eq.s32.totalorder %s18, 0
    %p165 = por %p163, %p164
    %p166 = scmp.ne.s32.totalorder %s154, %s155
    %p167 = scmp.eq.s32.totalorder %s19, 1
    %p168 = por %p166, %p167
    %p170 = scmp.ne.s32.totalorder %s155, %s169
    %p171 = scmp.eq.s32.totalorder %s19, 0
    %p172 = por %p170, %p171
    %s173 = ssub.s32 %s13, %s20
    %p174 = scmp.eq.s32.totalorder %s173, 0
    %s176 = sadd.s32 %s175, 1
    %s177 = scalar_select %p174, %s175, %s176
    %p180 = pneg %p174
    %p181 = scmp.eq.s32.totalorder %s13, 1
    %p182 = por %p180, %p181
    %p183 = scmp.ne.s32.totalorder %s175, %s178
    %p184 = scmp.eq.s32.totalorder %s13, 0
    %p185 = por %p183, %p184
    %p186 = scmp.ne.s32.totalorder %s175, %s178
    %p187 = scmp.eq.s32.totalorder %s18, 1
    %p188 = por %p186, %p187
    %p189 = scmp.ne.s32.totalorder %s178, %s179
    %p190 = scmp.eq.s32.totalorder %s18, 0
    %p191 = por %p189, %p190
    %p192 = scmp.ne.s32.totalorder %s178, %s179
    %p193 = scmp.eq.s32.totalorder %s19, 1
    %p194 = por %p192, %p193
    %p196 = scmp.ne.s32.totalorder %s179, %s195
    %p197 = scmp.eq.s32.totalorder %s19, 0
    %p198 = por %p196, %p197
    %p199 = scmp.le.s32.totalorder 1, %s13
    %p200 = scmp.lt.s32.totalorder %s13, 3
    %p201 = pnand %p199, %p200
    %p202 = pneg %p201
    // Predicated region
    $region9: #{tpu_custom_call.1} parent=5 // pred_check
      _
    $region10: #{tpu_custom_call.1} parent=5 // pred_check_branch
      %204 = sbr.rel (%p201) target = $region12
    $region11: #{tpu_custom_call.1} parent=5 // pred_region
      %s205 = ssub.s32 %s13, 1
      // Predicated region
      $region13: #{tpu_custom_call.1} parent=11 // pred_check
        %p206 = pneg %p60
      $region14: #{tpu_custom_call.1} parent=11 // pred_check_branch
        %208 = sbr.rel (%p206) target = $region16
      $region15: #{tpu_custom_call.1} parent=11 // pred_region
        _
      $region16: #{tpu_custom_call.1} parent=11 // pred_fallthru
        _
      // Predicated region
      $region17: #{tpu_custom_call.1} parent=11 // pred_check
        %p209 = pneg %p81
      $region18: #{tpu_custom_call.1} parent=11 // pred_check_branch
        %211 = sbr.rel (%p209) target = $region20
      $region19: #{tpu_custom_call.1} parent=11 // pred_region
        _
      $region20: #{tpu_custom_call.1} parent=11 // pred_fallthru
        _
      // Predicated region
      $region21: #{tpu_custom_call.1} parent=11 // pred_check
        %p212 = pneg %p102
      $region22: #{tpu_custom_call.1} parent=11 // pred_check_branch
        %214 = sbr.rel (%p212) target = $region24
      $region23: #{tpu_custom_call.1} parent=11 // pred_region
        _
      $region24: #{tpu_custom_call.1} parent=11 // pred_fallthru
        _
      // Predicated region
      $region25: #{tpu_custom_call.1} parent=11 // pred_check
        %p215 = pneg %p123
      $region26: #{tpu_custom_call.1} parent=11 // pred_check_branch
        %217 = sbr.rel (%p215) target = $region28
      $region27: #{tpu_custom_call.1} parent=11 // pred_region
        _
      $region28: #{tpu_custom_call.1} parent=11 // pred_fallthru
        _
      // Predicated region
      $region29: #{tpu_custom_call.1} parent=11 // pred_check
        %p218 = pneg %p144
      $region30: #{tpu_custom_call.1} parent=11 // pred_check_branch
        %220 = sbr.rel (%p218) target = $region32
      $region31: #{tpu_custom_call.1} parent=11 // pred_region
        _
      $region32: #{tpu_custom_call.1} parent=11 // pred_fallthru
        _
      // Predicated region
      $region33: #{tpu_custom_call.1} parent=11 // pred_check
        %p221 = pneg %p165
      $region34: #{tpu_custom_call.1} parent=11 // pred_check_branch
        %223 = sbr.rel (%p221) target = $region36
      $region35: #{tpu_custom_call.1} parent=11 // pred_region
        _
      $region36: #{tpu_custom_call.1} parent=11 // pred_fallthru
        _
    $region12: #{tpu_custom_call.1} parent=5 // pred_fallthru
      _
    %p224 = scmp.lt.s32.totalorder %s13, 2
    // Predicated region
    $region37: #{tpu_custom_call.1} parent=5 // pred_check
      %p225 = pneg %p224
    $region38: #{tpu_custom_call.1} parent=5 // pred_check_branch
      %227 = sbr.rel (%p225) target = $region40
    $region39: #{tpu_custom_call.1} parent=5 // pred_region
      // Predicated region
      $region41: #{tpu_custom_call.1} parent=39 // pred_check
        %p228 = pneg %p33
      $region42: #{tpu_custom_call.1} parent=39 // pred_check_branch
        %230 = sbr.rel (%p228) target = $region44
      $region43: #{tpu_custom_call.1} parent=39 // pred_region
        %p231 = scmp.lt.s32.totalorder %s13, 1
        %s232 = scalar_select %p231, %s13, 1
        %s233 = smul.addr %s232, 8
        %s234 = scalar_lea.vmem %s0, %s233
      $region44: #{tpu_custom_call.1} parent=39 // pred_fallthru
        _
    $region40: #{tpu_custom_call.1} parent=5 // pred_fallthru
      _
    %p235 = scmp.le.s32.totalorder 1, %s13
    %p236 = scmp.lt.s32.totalorder %s13, 3
    %p237 = pnand %p235, %p236
    %p238 = pneg %p237
    // Predicated region
    $region45: #{tpu_custom_call.1} parent=5 // pred_check
      _
    $region46: #{tpu_custom_call.1} parent=5 // pred_check_branch
      %240 = sbr.rel (%p237) target = $region48
    $region47: #{tpu_custom_call.1} parent=5 // pred_region
      %s241 = ssub.s32 %s13, 1
      %p242 = scmp.lt.s32.totalorder %s18, 1
      %s243 = scalar_select %p242, %s18, 1
      %s244 = smul.addr %s243, 8
      %s245 = scalar_lea.vmem %s0, %s244
      %p246 = pneg %p39
      %p247 = pneg %p36
      %p248 = pneg %p60
      %p249 = pneg %p57
      %p250 = pneg %p81
      %p251 = pneg %p78
      %p252 = pneg %p102
      %p253 = pneg %p99
      %p254 = pneg %p123
      %p255 = pneg %p120
      %p256 = pneg %p144
      %p257 = pneg %p141
      %p258 = pneg %p165
      %p259 = pneg %p162
      %p260 = pneg %p191
      %p261 = pneg %p188
      %p262 = scmp.lt.s32.totalorder %s18, 1
      %s263 = scalar_select %p262, %s18, 1
      %s264 = smul.addr %s263, 8
      %s265 = scalar_lea.vmem %s7, %s264
      %p266 = scmp.lt.s32.totalorder %s18, 1
      %s267 = scalar_select %p266, %s18, 1
      %s268 = smul.addr %s267, 8
      %s269 = scalar_lea.vmem %s0, %s268
      %p270 = scmp.lt.s32.totalorder %s18, 1
      %s271 = scalar_select %p270, %s18, 1
      %s272 = smul.addr %s271, 8
      %s273 = scalar_lea.vmem %s7, %s272
      %v275 = vld [vmem:[%s269] sm:$0xff]
      %v276 = vpack.c.bf16 %v275, %v275
      %v277 = vld [vmem:[%s1] sm:$0xf]
      %v278 = vld [vmem:[%s1 + $0x4] sm:$0xf]
      %v279 = vld [vmem:[%s1 + $0x8] sm:$0xf]
      %v280 = vld [vmem:[%s1 + $0xc] sm:$0xf]
      %v281 = vld [vmem:[%s2] sm:$0x1]
      %v283 = vlaneseq
      %v284 = vshrl.u32 %v283, 7
      %v285 = vsub.s32 0, %v284
      %v286 = vrot.slane %v281, %v285
      %v292 = vunpack.c.l.b16 %v277
      %v293 = vunpack.c.l.b16 %v278
      %v294 = vunpack.c.l.b16 %v279
      %v295 = vunpack.c.l.b16 %v280
      %v296 = vpack.c.b16 %v293, %v292
      %v297 = vpack.c.b16 %v295, %v294
      %vm300 = vcmask 261120
      %v302 = vsel %vm300, %v276, 0
      %304 = vmatprep.subr.bf16.mxu0 0
      %305 = vmatpush1.bf16.msra.mxu0 %v296
      %306 = vmatprep.subr.bf16.mxu0 0
      %307 = vmatpush1.bf16.msra.mxu0 %v297
      %308 = vmatprep.subr.bf16.mxu0 0
      %309 = vmatpush1.bf16.msra.mxu0 0
      %310 = vmatprep.subr.bf16.mxu0 0
      %311 = vmatpush1.bf16.msra.mxu0 0
      %312 = vmatprep.subr.bf16.mxu0 0
      %313 = vmatpush1.bf16.msra.mxu0 0
      %314 = vmatprep.subr.bf16.mxu0 0
      %315 = vmatpush1.bf16.msra.mxu0 0
      %316 = vmatprep.subr.bf16.mxu0 0
      %317 = vmatpush1.bf16.msra.mxu0 0
      %318 = vmatprep.subr.bf16.mxu0 0
      %319 = vmatpush1.bf16.msra.mxu0 0
      %320 = vmatprep.subr.bf16.mxu0 0
      %321 = vmatpush1.bf16.msra.mxu0 0
      %322 = vmatprep.subr.bf16.mxu0 0
      %323 = vmatpush1.bf16.msra.mxu0 0
      %324 = vmatprep.subr.bf16.mxu0 0
      %325 = vmatpush1.bf16.msra.mxu0 0
      %326 = vmatprep.subr.bf16.mxu0 0
      %327 = vmatpush1.bf16.msra.mxu0 0
      %328 = vmatprep.subr.bf16.mxu0 0
      %329 = vmatpush1.bf16.msra.mxu0 0
      %330 = vmatprep.subr.bf16.mxu0 0
      %331 = vmatpush1.bf16.msra.mxu0 0
      %332 = vmatprep.subr.bf16.mxu0 0
      %333 = vmatpush1.bf16.msra.mxu0 0
      %334 = vmatprep.subr.bf16.mxu0 0
      %335 = vmatpush1.bf16.msra.mxu0 0
      %336 = vmatprep.mubr.bf16.mxu0 0
      %337 = vmatmul.mubr.bf16.gmra.mrb[0].mxu0 %v302
      %v338 = vpop.f32.mrb[0].mxu0
      %v339 = vadd.f32 %v286, %v338
      %v340 = vpop.f32.mrb[0].mxu0
      %v341 = vpop.f32.mrb[0].mxu0
      %v342 = vpop.f32.mrb[0].mxu0
      %343 = vdwg.mxu0
      %v344 = vmax.f32 %v339, 0.0
      %v345 = vpack.c.bf16 %v344, %v344
      %v346 = vld [vmem:[%s3] sm:$0xf]
      %v347 = vld [vmem:[%s3 + $0x4] sm:$0xf]
      %v348 = vld [vmem:[%s3 + $0x8] sm:$0xf]
      %v349 = vld [vmem:[%s3 + $0xc] sm:$0xf]
      %v350 = vld [vmem:[%s3 + $0x10] sm:$0xf]
      %v351 = vld [vmem:[%s3 + $0x14] sm:$0xf]
      %v352 = vld [vmem:[%s3 + $0x18] sm:$0xf]
      %v353 = vld [vmem:[%s3 + $0x1c] sm:$0xf]
      %v354 = vld [vmem:[%s4] sm:$0x1]
      %v356 = vlaneseq
      %v357 = vshrl.u32 %v356, 7
      %v358 = vsub.s32 0, %v357
      %v359 = vrot.slane %v354, %v358
      %v369 = vunpack.c.l.b16 %v346
      %v370 = vunpack.c.l.b16 %v347
      %v371 = vunpack.c.l.b16 %v348
      %v372 = vunpack.c.l.b16 %v349
      %v373 = vunpack.c.l.b16 %v350
      %v374 = vunpack.c.l.b16 %v351
      %v375 = vunpack.c.l.b16 %v352
      %v376 = vunpack.c.l.b16 %v353
      %v377 = vpack.c.b16 %v370, %v369
      %v378 = vpack.c.b16 %v372, %v371
      %v379 = vpack.c.b16 %v374, %v373
      %v380 = vpack.c.b16 %v376, %v375
      %vm385 = vcmask 523264
      %v387 = vsel %vm385, %v345, 0
      %389 = vmatprep.subr.bf16.mxu0 0
      %390 = vmatpush1.bf16.msra.mxu0 %v377
      %391 = vmatprep.subr.bf16.mxu0 0
      %392 = vmatpush1.bf16.msra.mxu0 %v378
      %393 = vmatprep.subr.bf16.mxu0 0
      %394 = vmatpush1.bf16.msra.mxu0 %v379
      %395 = vmatprep.subr.bf16.mxu0 0
      %396 = vmatpush1.bf16.msra.mxu0 %v380
      %397 = vmatprep.subr.bf16.mxu0 0
      %398 = vmatpush1.bf16.msra.mxu0 0
      %399 = vmatprep.subr.bf16.mxu0 0
      %400 = vmatpush1.bf16.msra.mxu0 0
      %401 = vmatprep.subr.bf16.mxu0 0
      %402 = vmatpush1.bf16.msra.mxu0 0
      %403 = vmatprep.subr.bf16.mxu0 0
      %404 = vmatpush1.bf16.msra.mxu0 0
      %405 = vmatprep.subr.bf16.mxu0 0
      %406 = vmatpush1.bf16.msra.mxu0 0
      %407 = vmatprep.subr.bf16.mxu0 0
      %408 = vmatpush1.bf16.msra.mxu0 0
      %409 = vmatprep.subr.bf16.mxu0 0
      %410 = vmatpush1.bf16.msra.mxu0 0
      %411 = vmatprep.subr.bf16.mxu0 0
      %412 = vmatpush1.bf16.msra.mxu0 0
      %413 = vmatprep.subr.bf16.mxu0 0
      %414 = vmatpush1.bf16.msra.mxu0 0
      %415 = vmatprep.subr.bf16.mxu0 0
      %416 = vmatpush1.bf16.msra.mxu0 0
      %417 = vmatprep.subr.bf16.mxu0 0
      %418 = vmatpush1.bf16.msra.mxu0 0
      %419 = vmatprep.subr.bf16.mxu0 0
      %420 = vmatpush1.bf16.msra.mxu0 0
      %421 = vmatprep.mubr.bf16.mxu0 0
      %422 = vmatmul.mubr.bf16.gmra.mrb[0].mxu0 %v387
      %v423 = vpop.f32.mrb[0].mxu0
      %v424 = vadd.f32 %v359, %v423
      %v425 = vpop.f32.mrb[0].mxu0
      %v426 = vpop.f32.mrb[0].mxu0
      %v427 = vpop.f32.mrb[0].mxu0
      %428 = vdwg.mxu0
      %v429 = vmax.f32 %v424, 0.0
      %v430 = vld [vmem:[%s5] sm:$0xff]
      %v431 = vld [vmem:[%s5 + $0x8] sm:$0xff]
      %v432 = vld [vmem:[%s5 + $0x10] sm:$0xff]
      %v433 = vld [vmem:[%s5 + $0x18] sm:$0xff]
      %v434 = vld [vmem:[%s5 + $0x20] sm:$0xff]
      %v435 = vld [vmem:[%s5 + $0x28] sm:$0xff]
      %v436 = vld [vmem:[%s5 + $0x30] sm:$0xff]
      %v437 = vld [vmem:[%s5 + $0x38] sm:$0xff]
      %v438 = vld [vmem:[%s6] sm:$0x1]
      %v440 = vlaneseq
      %v441 = vshrl.u32 %v440, 7
      %v442 = vsub.s32 0, %v441
      %v443 = vrot.slane %v438, %v442
      %v446 = vsel %vm385, %v429, 0
      %448 = vmatprep.subr.mxu0 0.0
      %449 = vmatpush1.msra.mxu0 %v430
      %450 = vmatprep.subr.mxu0 0.0
      %451 = vmatpush1.msra.mxu0 %v431
      %452 = vmatprep.subr.mxu0 0.0
      %453 = vmatpush1.msra.mxu0 %v432
      %454 = vmatprep.subr.mxu0 0.0
      %455 = vmatpush1.msra.mxu0 %v433
      %456 = vmatprep.subr.mxu0 0.0
      %457 = vmatpush1.msra.mxu0 %v434
      %458 = vmatprep.subr.mxu0 0.0
      %459 = vmatpush1.msra.mxu0 %v435
      %460 = vmatprep.subr.mxu0 0.0
      %461 = vmatpush1.msra.mxu0 %v436
      %462 = vmatprep.subr.mxu0 0.0
      %463 = vmatpush1.msra.mxu0 %v437
      %464 = vmatprep.subr.mxu0 0.0
      %465 = vmatpush1.msra.mxu0 0.0
      %466 = vmatprep.subr.mxu0 0.0
      %467 = vmatpush1.msra.mxu0 0.0
      %468 = vmatprep.subr.mxu0 0.0
      %469 = vmatpush1.msra.mxu0 0.0
      %470 = vmatprep.subr.mxu0 0.0
      %471 = vmatpush1.msra.mxu0 0.0
      %472 = vmatprep.subr.mxu0 0.0
      %473 = vmatpush1.msra.mxu0 0.0
      %474 = vmatprep.subr.mxu0 0.0
      %475 = vmatpush1.msra.mxu0 0.0
      %476 = vmatprep.subr.mxu0 0.0
      %477 = vmatpush1.msra.mxu0 0.0
      %478 = vmatprep.subr.mxu0 0.0
      %479 = vmatpush1.msra.mxu0 0.0
      %480 = vmatprep.subr.mxu0 0.0
      %481 = vmatpush1.msra.mxu0 0.0
      %482 = vmatprep.subr.mxu0 0.0
      %483 = vmatpush1.msra.mxu0 0.0
      %484 = vmatprep.subr.mxu0 0.0
      %485 = vmatpush1.msra.mxu0 0.0
      %486 = vmatprep.subr.mxu0 0.0
      %487 = vmatpush1.msra.mxu0 0.0
      %488 = vmatprep.subr.mxu0 0.0
      %489 = vmatpush1.msra.mxu0 0.0
      %490 = vmatprep.subr.mxu0 0.0
      %491 = vmatpush1.msra.mxu0 0.0
      %492 = vmatprep.subr.mxu0 0.0
      %493 = vmatpush1.msra.mxu0 0.0
      %494 = vmatprep.subr.mxu0 0.0
      %495 = vmatpush1.msra.mxu0 0.0
      %496 = vmatprep.subr.mxu0 0.0
      %497 = vmatpush1.msra.mxu0 0.0
      %498 = vmatprep.subr.mxu0 0.0
      %499 = vmatpush1.msra.mxu0 0.0
      %500 = vmatprep.subr.mxu0 0.0
      %501 = vmatpush1.msra.mxu0 0.0
      %502 = vmatprep.subr.mxu0 0.0
      %503 = vmatpush1.msra.mxu0 0.0
      %504 = vmatprep.subr.mxu0 0.0
      %505 = vmatpush1.msra.mxu0 0.0
      %506 = vmatprep.subr.mxu0 0.0
      %507 = vmatpush1.msra.mxu0 0.0
      %508 = vmatprep.subr.mxu0 0.0
      %509 = vmatpush1.msra.mxu0 0.0
      %510 = vmatprep.subr.mxu0 0.0
      %511 = vmatpush1.msra.mxu0 0.0
      %512 = vmatprep.mubr.f32.mxu0 0.0
      %513 = vmatmul.mubr.f32.gmra.mrb[0].mxu0 %v446
      %v514 = vpop.f32.mrb[0].mxu0
      %v515 = vadd.f32 %v443, %v514
      %v516 = vpop.f32.mrb[0].mxu0
      %517 = vdwg.mxu0
      %v518 = vxor.u32 %v515, 2147483648
      %v519 = vmul.f32 %v518, 1.442695
      %v520 = vpow.pop %v519
      %v521 = vadd.f32 %v520, 1.0
      %v522 = vrcp.pop %v521
      %v523 = vmul.f32 1.0, %v522
      %vm524 = vcmask 31744
      %525 = vst.msk [vmem:[%s273] sm:$0xff] %vm524, %v523
      %p526 = scmp.lt.s32.totalorder %s18, 1
      %s527 = scalar_select %p526, %s18, 1
      %s528 = smul.addr %s527, 8
      %s529 = scalar_lea.vmem %s7, %s528
      // Predicated region
      $region49: #{tpu_custom_call.1} parent=47 // pred_check
        %p530 = pneg %p188
      $region50: #{tpu_custom_call.1} parent=47 // pred_check_branch
        %532 = sbr.rel (%p530) target = $region52
      $region51: #{tpu_custom_call.1} parent=47 // pred_region
        _
      $region52: #{tpu_custom_call.1} parent=47 // pred_fallthru
        _
    $region48: #{tpu_custom_call.1} parent=5 // pred_fallthru
      _
    %p533 = scmp.le.s32.totalorder 2, %s13
    // Predicated region
    $region53: #{tpu_custom_call.1} parent=5 // pred_check
      %p534 = pneg %p533
    $region54: #{tpu_custom_call.1} parent=5 // pred_check_branch
      %536 = sbr.rel (%p534) target = $region56
    $region55: #{tpu_custom_call.1} parent=5 // pred_region
      %s537 = ssub.s32 %s13, 2
      // Predicated region
      $region57: #{tpu_custom_call.1} parent=55 // pred_check
        %p538 = pneg %p194
      $region58: #{tpu_custom_call.1} parent=55 // pred_check_branch
        %540 = sbr.rel (%p538) target = $region60
      $region59: #{tpu_custom_call.1} parent=55 // pred_region
        %p541 = scmp.lt.s32.totalorder %s19, 1
        %s542 = scalar_select %p541, %s19, 1
        %s543 = smul.addr %s542, 8
        %s544 = scalar_lea.vmem %s7, %s543
      $region60: #{tpu_custom_call.1} parent=55 // pred_fallthru
        _
    $region56: #{tpu_custom_call.1} parent=5 // pred_fallthru
      _
  $region6: #{tpu_custom_call.1} parent=0 // loop_footer
    %s17 = sadd.s32 1, %s13
  $region7: #{tpu_custom_call.1} parent=0 // loop_footer_branch
    %12 = sbr.rel target = $region3
  $region8: #{tpu_custom_call.1} parent=0 // loop_exit
    _

</llo_original>
